<compile_context>
chip_gen: v7x
topology: tpu7x:2x2x1
jax: 0.10.0
libtpu: 0.0.40
codegen_flags: <defaults>
</compile_context>

<pallas_src>
import math

import jax
import jax.numpy as jnp
from jax.experimental import pallas as pl
from jax.experimental.pallas import tpu as pltpu

_FAST_PATH_BYTES = 1 << 20  # below this, a plain XLA add beats any kernel launch
_MAX_LANE_TILE = 512 * 128  # cap per-step lane width


def _add_bias_kernel(x_ref, b_ref, o_ref):
    # x_ref: (TR, TL); b_ref: (TR, 1) / (rows, 1) / (1, TL). jnp broadcasting.
    o_ref[...] = x_ref[...] + b_ref[...]


def _block_config():
    """(per-step block bytes, vmem_limit_bytes) tuned per TPU generation."""
    kind = ""
    try:
        kind = (getattr(jax.devices()[0], "device_kind", "") or "").lower()
    except Exception:
        pass
    if "v5 lite" in kind or "v5e" in kind or "v5litepod" in kind:
        return 4 << 20, 48 << 20          # v5e: DMA already hides per-step overhead
    if "v6" in kind:
        return 16 << 20, 96 << 20         # v6e: 128 MiB physical VMEM, go big
    return 8 << 20, 48 << 20              # v7x (64 MiB VMEM) / unknown: conservative


def _sublane_pack(itemsize):
    """Sublane packing group: 8 for f32, 16 for bf16, 32 for int8/fp8."""
    return max(8, 32 // max(1, itemsize))


def _choose_tiles(rows, lanes, itemsize, block_bytes, sub):
    """Pick (tr, tl): tl multiple of 128 (or full), tr multiple of sub (or full),
    tr*tl*itemsize ~<= block_bytes, and at least 2 grid steps when possible."""
    if lanes <= 128 or lanes * sub * itemsize <= block_bytes:
        tl = lanes                                   # full lane extent
    else:
        tl = (block_bytes // (sub * itemsize)) // 128 * 128
        tl = max(128, min(tl, _MAX_LANE_TILE))
        if tl >= lanes:
            tl = lanes
    tr = block_bytes // max(1, tl * itemsize)
    tr = (tr // sub) * sub
    if tr <= 0:
        tr = sub
    if tr >= rows:
        tr = rows
    # Make sure a reasonably sized problem gives >= 2 "parallel" steps
    # (v7x megacore: a 1-step grid leaves one TensorCore idle).
    if pl.cdiv(rows, tr) * pl.cdiv(lanes, tl) == 1 and rows >= 2 * sub:
        half = (rows + 1) // 2
        tr = ((half + sub - 1) // sub) * sub
    return tr, tl


def _densify_factor(n_rows, c, max_lanes=2048):
    """Largest divisor k of n_rows with k*c <= max_lanes; prefer (k*c)%128==0."""
    best_any, best_128 = 1, 0
    kmax = min(n_rows, max(1, max_lanes // max(1, c)))
    for k in range(1, kmax + 1):
        if n_rows % k == 0:
            best_any = k
            if (k * c) % 128 == 0:
                best_128 = k
    return best_128 if best_128 else best_any


def _pallas_add(x2d, b2d, b_block_shape, b_index_map, tr, tl, vmem_limit, donate):
    rows, lanes = x2d.shape
    grid = (pl.cdiv(rows, tr), pl.cdiv(lanes, tl))
    kwargs = {}
    if donate:
        kwargs["input_output_aliases"] = {0: 0}
    return pl.pallas_call(
        _add_bias_kernel,
        out_shape=jax.ShapeDtypeStruct(x2d.shape, x2d.dtype),
        grid=grid,
        in_specs=[
            pl.BlockSpec((tr, tl), lambda i, j: (i, j)),
            pl.BlockSpec(b_block_shape, b_index_map),
        ],
        out_specs=pl.BlockSpec((tr, tl), lambda i, j: (i, j)),
        compiler_params=pltpu.CompilerParams(
            dimension_semantics=("parallel", "parallel"),
            vmem_limit_bytes=vmem_limit,
        ),
        **kwargs,
    )(x2d, b2d)


class AddBias:
    """JAX/Pallas port of the PyTorch AddBias module."""

    def __init__(self, bias, *, donate_x=False):
        # matches nn.Parameter(bias.unsqueeze(1)): stored as (C, 1)
        self._bias = jnp.asarray(bias).reshape(-1, 1)
        self._donate_x = donate_x

    def __call__(self, x):
        if x.ndim not in (2, 4):
            raise ValueError("AddBias supports 2D or 4D inputs only")
        C = self._bias.shape[0]
        bias = self._bias.astype(x.dtype)                      # (C, 1)
        itemsize = jnp.dtype(x.dtype).itemsize

        # --- small-input fast path: let XLA fuse a plain broadcast add -------
        if x.size * itemsize <= _FAST_PATH_BYTES:
            if x.ndim == 2:
                return x + bias.reshape(1, C)
            return x + bias.reshape(1, C, 1, 1)

        block_bytes, vmem_limit = _block_config()
        sub = _sublane_pack(itemsize)

        if x.ndim == 2:
            N = x.shape[0]
            assert x.shape[1] == C
            # Fold rows into lanes so the last dim is (ideally) a 128-multiple.
            k = _densify_factor(N, C)
            rows, lanes = N // k, k * C
            x2d = x.reshape(rows, lanes)
            b2d = jnp.tile(bias.reshape(1, C), (1, k))         # (1, k*C)
            tr, tl = _choose_tiles(rows, lanes, itemsize, block_bytes, sub)
            out = _pallas_add(x2d, b2d, (1, tl), lambda i, j: (0, j),
                              tr, tl, vmem_limit, self._donate_x)
            return out.reshape(N, C)

        # ---- 4D path (NCHW) --------------------------------------------------
        N, Cx, H, W = x.shape
        assert Cx == C
        hw = H * W

        if hw % 128 == 0:
            # Layout A: (N*C, H*W) — channels fold into sublanes, spatial is the
            # lane-dense last dim. Bias is a per-row column with period C.
            rows, lanes = N * C, hw
            x2d = x.reshape(rows, lanes)
            tr, tl = _choose_tiles(rows, lanes, itemsize, block_bytes, sub)
            period = (sub * C) // math.gcd(sub, C)
            if tr < rows and period <= tr:
                # One-period bias, constant block index -> DMA'd once, resident.
                tr = (tr // period) * period
                b2d = jnp.tile(bias, (tr // C, 1))             # (tr, 1)
                b_shape, b_map = (tr, 1), (lambda i, j: (0, 0))
            else:
                b2d = jnp.tile(bias, (N, 1))                   # (N*C, 1)
                if tr >= rows:
                    b_shape, b_map = (rows, 1), (lambda i, j: (0, 0))
                else:
                    b_shape, b_map = (tr, 1), (lambda i, j: (i, 0))
            out = _pallas_add(x2d, b2d, b_shape, b_map, tr, tl,
                              vmem_limit, self._donate_x)
        else:
            # Layout B: (N, C*H*W) — lane-dense even for awkward spatial sizes.
            rows, lanes = N, C * hw
            x2d = x.reshape(rows, lanes)
            b2d = jnp.repeat(bias.reshape(C), hw).reshape(1, lanes)   # (1, C*H*W)
            tr, tl = _choose_tiles(rows, lanes, itemsize, block_bytes, sub)
            out = _pallas_add(x2d, b2d, (1, tl), lambda i, j: (0, j),
                              tr, tl, vmem_limit, self._donate_x)
        return out.reshape(N, C, H, W)


if __name__ == "__main__":
    key = jax.random.PRNGKey(0)
    k_b4, k_b16, k_b32, k_x4, k_x2, k_a, k_bb, k_c = jax.random.split(key, 8)

    # --- module-spec sized inputs (fast path) --------------------------------
    C = 4
    bias4 = jax.random.normal(k_b4, (C,), dtype=jnp.float32)
    mod4 = AddBias(bias4)

    x4 = jax.random.normal(k_x4, (2, C, 16, 16), dtype=jnp.float32)   # NCHW
    y4 = mod4(x4)
    jax.block_until_ready(y4)
    assert y4.shape == x4.shape and y4.dtype == x4.dtype
    assert jnp.allclose(y4, x4 + bias4.reshape(1, C, 1, 1), atol=1e-6)

    x2 = jax.random.normal(k_x2, (2, C), dtype=jnp.float32)           # (N, C)
    y2 = mod4(x2)
    jax.block_until_ready(y2)
    assert jnp.allclose(y2, x2 + bias4.reshape(1, C), atol=1e-6)

    # --- larger inputs that exercise the Pallas paths ------------------------
    C16 = 16
    bias16 = jax.random.normal(k_b16, (C16,), dtype=jnp.float32)
    mod16 = AddBias(bias16)

    # Layout A: H*W multiple of 128 -> (N*C, H*W) + resident one-period bias
    xa = jax.random.normal(k_a, (4, C16, 64, 128), dtype=jnp.float32)
    ya = mod16(xa)
    jax.block_until_ready(ya)
    assert jnp.allclose(ya, xa + bias16.reshape(1, C16, 1, 1), atol=1e-6)

    # Layout B: H*W not a multiple of 128 -> (N, C*H*W) lane-dense row bias
    xb = jax.random.normal(k_bb, (32, C16, 30, 30), dtype=jnp.float32)
    yb = mod16(xb)
    jax.block_until_ready(yb)
    assert jnp.allclose(yb, xb + bias16.reshape(1, C16, 1, 1), atol=1e-6)

    # 2D Pallas path: lanes folded to a 128-multiple
    C32 = 32
    bias32 = jax.random.normal(k_b32, (C32,), dtype=jnp.float32)
    mod32 = AddBias(bias32)
    xc = jax.random.normal(k_c, (16384, C32), dtype=jnp.float32)
    yc = mod32(xc)
    jax.block_until_ready(yc)
    assert jnp.allclose(yc, xc + bias32.reshape(1, C32), atol=1e-6)

    print("KERNEL_OK")
</pallas_src>

<mosaic_0001>
module attributes {stable_mosaic.version = 11 : i64} {
  func.func @_add_bias_kernel(%arg0: i32, %arg1: i32, %arg2: memref<32x8192xf32, #tpu.memory_space<vmem>>, %arg3: memref<32x1xf32, #tpu.memory_space<vmem>>, %arg4: memref<32x8192xf32, #tpu.memory_space<vmem>>) attributes {dimension_semantics = [#tpu.dimension_semantics<parallel>, #tpu.dimension_semantics<parallel>], iteration_bounds = array<i64: 2, 1>, scalar_prefetch = 0 : i64, scratch_operands = 0 : i64, tpu.core_type = #tpu.core_type<tc>, window_params = [{transform_indices = @transform_0, window_bounds = array<i64: 32, 8192>}, {pipeline_mode = #tpu.pipeline_mode<synchronous>, transform_indices = @transform_1, window_bounds = array<i64: 32, 1>}, {transform_indices = @transform_2, window_bounds = array<i64: 32, 8192>}]} {
    %c0 = arith.constant 0 : index
    %c0_0 = arith.constant 0 : index
    %0 = vector.load %arg2[%c0, %c0_0] : memref<32x8192xf32, #tpu.memory_space<vmem>>, vector<32x8192xf32>
    %c0_1 = arith.constant 0 : index
    %c0_2 = arith.constant 0 : index
    %1 = vector.load %arg3[%c0_1, %c0_2] : memref<32x1xf32, #tpu.memory_space<vmem>>, vector<32x1xf32>
    %2 = vector.broadcast %1 : vector<32x1xf32> to vector<32x8192xf32>
    %3 = arith.addf %0, %2 : vector<32x8192xf32>
    %c0_3 = arith.constant 0 : index
    %c0_4 = arith.constant 0 : index
    %4 = vector.load %arg4[%c0_3, %c0_4] : memref<32x8192xf32, #tpu.memory_space<vmem>>, vector<32x8192xf32>
    tpu.vector_store %arg4[%c0_3, %c0_4], %3 {strides = array<i32>} : memref<32x8192xf32, #tpu.memory_space<vmem>>, vector<32x8192xf32>,
    return
  }
  func.func @transform_0(%arg0: i32, %arg1: i32) -> (i32, i32) {
    %c0_i32 = arith.constant 0 : i32
    return %arg0, %arg1 : i32, i32
  }
  func.func @transform_1(%arg0: i32, %arg1: i32) -> (i32, i32) {
    %c0_i32 = arith.constant 0 : i32
    %c0_i32_0 = arith.constant 0 : i32
    %c0_i32_1 = arith.constant 0 : i32
    return %c0_i32, %c0_i32_0 : i32, i32
  }
  func.func @transform_2(%arg0: i32, %arg1: i32) -> (i32, i32) {
    %c0_i32 = arith.constant 0 : i32
    return %arg0, %arg1 : i32, i32
  }
}

</mosaic_0001>

<llo_original>
// kernel: tpu_custom_call.1
$region0: #{tpu_custom_call.1}
  #allocation0 [shape = 'u32[]', space=smem, size = 0x4, offset = 0x4, fixed_abs, tag = 'smem constant byte address 0x4 - core index']
  #allocation1 [shape = 'u32[144,128]{1,0:T(1,128)}', space=vmem, size = 0x12000, scoped, tag = 'internal scratch']
  %s0 = inlined_call_operand.hbm [shape: f32[64,8192], index: 0, kind: input, shape index: {}]
  %s1 = inlined_call_operand.vmem [shape: f32[32,1], index: 1, kind: input, shape index: {}]
  %s2 = inlined_call_operand.hbm [shape: f32[64,8192], index: 2, kind: output, shape index: {}]
  %s3 = sld [smem:[#allocation0]]
  $region45: #{tpu_custom_call.1} parent=0
    _
  %s5 = ssub.s32 1, %s3
  %s6 = scalar_select 0, %s5, %s3
  $region1: #{tpu_custom_call.1} parent=0
    #allocation2 [shape = 'u8[2097152]{0}', space=vmem, size = 0x200000, scoped, tag = 'input window, operand 0']
    #allocation3 [shape = 's32[2]{0}', space=sflag, size = 0x8, scoped, tag = 'scoped memory for tpu_custom_call.1']
    #allocation4 [shape = 's32[2]{0}', space=sflag, size = 0x8, scoped, tag = 'scoped memory for tpu_custom_call.1']
    #allocation5 [shape = 'u8[2097152]{0}', space=vmem, size = 0x200000, scoped, tag = 'output window, operand 0']
    %7 = vsyncpa [#allocation3], 0
    %s8 = scalar_lea.sflag [#allocation3], 1
    %9 = vsyncpa %s8, 0
    %10 = vsyncpa [#allocation4], 0
    %s11 = scalar_lea.sflag [#allocation4], 1
    %12 = vsyncpa %s11, 0
    loop: start=0, step=1, limit=4
    $region2: #{tpu_custom_call.1} parent=1 // loop_pre_header
      _
    $region3: #{tpu_custom_call.1} parent=1 // loop_header
      %s14 = sphi 0, %s18
      %p15 = scmp.ge.s32.totalorder %s14, 4
      %s21 = sphi 0, %s33
      %s22 = sphi 0, %s29
      %s23 = sphi 0, %s21
      %s24 = sphi 0, %s22
      %s25 = sphi 0, %s23
      %s26 = sphi 0, %s24
      %s38 = sphi 0, %s40
      %s41 = sphi 0, %s38
      %s42 = sphi 0, %s41
      %s58 = sphi 0, %s42
      %s62 = sphi 0, %s62
      %s64 = sphi 0, %s62
      %s65 = sphi 0, %s64
      %s79 = sphi 0, %s65
      %s87 = sphi 0, %s89
      %s90 = sphi 0, %s87
      %s91 = sphi 0, %s90
      %s107 = sphi 0, %s91
    $region4: #{tpu_custom_call.1} parent=1 // loop_header_branch
      %17 = sbr.rel (%p15) target = $region8
    $region5: #{tpu_custom_call.1} parent=1 // loop_body
      %s19 = ssub.s32 %s14, 1
      %s20 = ssub.s32 %s14, 2
      %s27 = sadd.s32 1, %s22
      %p28 = scmp.ge.s32.totalorder %s27, 1
      %s29 = scalar_select %p28, 0, %s27
      %s30 = sadd.s32 1, %s21
      %s31 = scalar_select %p28, %s30, %s21
      %p32 = scmp.ge.s32.totalorder %s31, 2
      %s33 = scalar_select %p32, 0, %s31
      %s34 = ssub.s32 %s21, %s33
      %s35 = ssub.s32 %s22, %s29
      %s36 = sor.u32 %s34, %s35
      %p37 = scmp.eq.s32.totalorder %s36, 0
      %s39 = sadd.s32 %s38, 1
      %s40 = scalar_select %p37, %s38, %s39
      %p43 = pneg %p37
      %p44 = scmp.eq.s32.totalorder %s14, 1
      %p45 = por %p43, %p44
      %p46 = scmp.ne.s32.totalorder %s38, %s41
      %p47 = scmp.eq.s32.totalorder %s14, 0
      %p48 = por %p46, %p47
      %p49 = scmp.ne.s32.totalorder %s38, %s41
      %p50 = scmp.eq.s32.totalorder %s19, 1
      %p51 = por %p49, %p50
      %p52 = scmp.ne.s32.totalorder %s41, %s42
      %p53 = scmp.eq.s32.totalorder %s19, 0
      %p54 = por %p52, %p53
      %p55 = scmp.ne.s32.totalorder %s41, %s42
      %p56 = scmp.eq.s32.totalorder %s20, 1
      %p57 = por %p55, %p56
      %p59 = scmp.ne.s32.totalorder %s42, %s58
      %p60 = scmp.eq.s32.totalorder %s20, 0
      %p61 = por %p59, %p60
      %s63 = sadd.s32 %s62, 1
      %p66 = scmp.eq.s32.totalorder %s14, 1
      %p67 = scmp.ne.s32.totalorder %s62, %s64
      %p68 = scmp.eq.s32.totalorder %s14, 0
      %p69 = por %p67, %p68
      %p70 = scmp.ne.s32.totalorder %s62, %s64
      %p71 = scmp.eq.s32.totalorder %s19, 1
      %p72 = por %p70, %p71
      %p73 = scmp.ne.s32.totalorder %s64, %s65
      %p74 = scmp.eq.s32.totalorder %s19, 0
      %p75 = por %p73, %p74
      %p76 = scmp.ne.s32.totalorder %s64, %s65
      %p77 = scmp.eq.s32.totalorder %s20, 1
      %p78 = por %p76, %p77
      %p80 = scmp.ne.s32.totalorder %s65, %s79
      %p81 = scmp.eq.s32.totalorder %s20, 0
      %p82 = por %p80, %p81
      %s83 = ssub.s32 %s21, %s33
      %s84 = ssub.s32 %s22, %s29
      %s85 = sor.u32 %s83, %s84
      %p86 = scmp.eq.s32.totalorder %s85, 0
      %s88 = sadd.s32 %s87, 1
      %s89 = scalar_select %p86, %s87, %s88
      %p92 = pneg %p86
      %p93 = scmp.eq.s32.totalorder %s14, 1
      %p94 = por %p92, %p93
      %p95 = scmp.ne.s32.totalorder %s87, %s90
      %p96 = scmp.eq.s32.totalorder %s14, 0
      %p97 = por %p95, %p96
      %p98 = scmp.ne.s32.totalorder %s87, %s90
      %p99 = scmp.eq.s32.totalorder %s19, 1
      %p100 = por %p98, %p99
      %p101 = scmp.ne.s32.totalorder %s90, %s91
      %p102 = scmp.eq.s32.totalorder %s19, 0
      %p103 = por %p101, %p102
      %p104 = scmp.ne.s32.totalorder %s90, %s91
      %p105 = scmp.eq.s32.totalorder %s20, 1
      %p106 = por %p104, %p105
      %p108 = scmp.ne.s32.totalorder %s91, %s107
      %p109 = scmp.eq.s32.totalorder %s20, 0
      %p110 = por %p108, %p109
      %p111 = scmp.le.s32.totalorder 1, %s14
      %p112 = scmp.lt.s32.totalorder %s14, 3
      %p113 = pnand %p111, %p112
      %p114 = pneg %p113
      // Predicated region
      $region9: #{tpu_custom_call.1} parent=5 // pred_check
        _
      $region10: #{tpu_custom_call.1} parent=5 // pred_check_branch
        %116 = sbr.rel (%p113) target = $region12
      $region11: #{tpu_custom_call.1} parent=5 // pred_region
        %s117 = ssub.s32 %s14, 1
        // Predicated region
        $region13: #{tpu_custom_call.1} parent=11 // pred_check
          %p118 = pneg %p75
        $region14: #{tpu_custom_call.1} parent=11 // pred_check_branch
          %120 = sbr.rel (%p118) target = $region16
        $region15: #{tpu_custom_call.1} parent=11 // pred_region
          _
        $region16: #{tpu_custom_call.1} parent=11 // pred_fallthru
          _
      $region12: #{tpu_custom_call.1} parent=5 // pred_fallthru
        _
      %p121 = scmp.lt.s32.totalorder %s14, 2
      // Predicated region
      $region17: #{tpu_custom_call.1} parent=5 // pred_check
        %p122 = pneg %p121
      $region18: #{tpu_custom_call.1} parent=5 // pred_check_branch
        %124 = sbr.rel (%p122) target = $region20
      $region19: #{tpu_custom_call.1} parent=5 // pred_region
        // Predicated region
        $region21: #{tpu_custom_call.1} parent=19 // pred_check
          %p125 = pneg %p48
        $region22: #{tpu_custom_call.1} parent=19 // pred_check_branch
          %127 = sbr.rel (%p125) target = $region24
        $region23: #{tpu_custom_call.1} parent=19 // pred_region
          %s128 = sand.u32 %s38, 1
          %s129 = scalar_lea.sflag [#allocation3], %s128
          %s130 = sand.u32 %s38, 1
          %s131 = smul.addr %s130, 2048
          %s132 = scalar_lea.vmem [#allocation2], %s131
          %s133 = smul.u32 4, %s21
          %s134 = smul.u32 64, %s22
          %s136 = ssub.s32 32768, 32768
          %137 = vsyncadd %s129, %s136
          %s138 = smul.addr %s133, 64
          %s139 = sadd.s32 %s134, %s138
          %s140 = smul.addr %s139, 128
          %s141 = scalar_lea.hbm %s0, %s140
          %s142 = sshll.u32 %s132, 4
          %s143 = int_to_ptr.vmem [resolvable:$true] %s142
          %148 = dma.hbm_to_vmem [thread:$0]  %s141, 32768, %s143, %s129, 8192, 8192, 512
        $region24: #{tpu_custom_call.1} parent=19 // pred_fallthru
          _
      $region20: #{tpu_custom_call.1} parent=5 // pred_fallthru
        _
      %p149 = scmp.le.s32.totalorder 1, %s14
      %p150 = scmp.lt.s32.totalorder %s14, 3
      %p151 = pnand %p149, %p150
      %p152 = pneg %p151
      // Predicated region
      $region25: #{tpu_custom_call.1} parent=5 // pred_check
        _
      $region26: #{tpu_custom_call.1} parent=5 // pred_check_branch
        %154 = sbr.rel (%p151) target = $region28
      $region27: #{tpu_custom_call.1} parent=5 // pred_region
        %s155 = ssub.s32 %s14, 1
        %s156 = sand.u32 %s41, 1
        %s157 = scalar_lea.sflag [#allocation3], %s156
        %s158 = sand.u32 %s41, 1
        %s159 = smul.addr %s158, 2048
        %s160 = scalar_lea.vmem [#allocation2], %s159
        // Predicated region
        $region29: #{tpu_custom_call.1} parent=27 // pred_check
          %p161 = pneg %p54
        $region30: #{tpu_custom_call.1} parent=27 // pred_check_branch
          %163 = sbr.rel (%p161) target = $region32
        $region31: #{tpu_custom_call.1} parent=27 // pred_region
          %164 = dma.done %s157, 32768
        $region32: #{tpu_custom_call.1} parent=27 // pred_fallthru
          _
        %s165 = sand.u32 %s41, 1
        %s166 = scalar_lea.sflag [#allocation3], %s165
        %s167 = sand.u32 %s41, 1
        %s168 = smul.addr %s167, 2048
        %s169 = scalar_lea.vmem [#allocation2], %s168
        %p170 = pneg %p54
        %p171 = pneg %p51
        %p172 = pneg %p75
        %p173 = pneg %p72
        %p174 = pneg %p103
        %p175 = pneg %p100
        %s176 = sand.u32 %s90, 1
        %s177 = scalar_lea.sflag [#allocation4], %s176
        %s178 = sand.u32 %s90, 1
        %s179 = smul.addr %s178, 2048
        %s180 = scalar_lea.vmem [#allocation5], %s179
        %s181 = smul.u32 4, %s23
        %s182 = smul.u32 64, %s24
        %s183 = smul.u32 4, %s23
        %s184 = smul.u32 64, %s24
        %v185 = vld [vmem:[%s160] sm:$0xff]
        %v186 = vld [vmem:[%s160 + $0x8] sm:$0xff]
        %v187 = vld [vmem:[%s160 + $0x10] sm:$0xff]
        %v188 = vld [vmem:[%s160 + $0x18] sm:$0xff]
        %v189 = vld [vmem:[%s160 + $0x20] sm:$0xff]
        %v190 = vld [vmem:[%s160 + $0x28] sm:$0xff]
        %v191 = vld [vmem:[%s160 + $0x30] sm:$0xff]
        %v192 = vld [vmem:[%s160 + $0x38] sm:$0xff]
        %v193 = vld [vmem:[%s160 + $0x40] sm:$0xff]
        %v194 = vld [vmem:[%s160 + $0x48] sm:$0xff]
        %v195 = vld [vmem:[%s160 + $0x50] sm:$0xff]
        %v196 = vld [vmem:[%s160 + $0x58] sm:$0xff]
        %v197 = vld [vmem:[%s160 + $0x60] sm:$0xff]
        %v198 = vld [vmem:[%s160 + $0x68] sm:$0xff]
        %v199 = vld [vmem:[%s160 + $0x70] sm:$0xff]
        %v200 = vld [vmem:[%s160 + $0x78] sm:$0xff]
        %v201 = vld [vmem:[%s160 + $0x80] sm:$0xff]
        %v202 = vld [vmem:[%s160 + $0x88] sm:$0xff]
        %v203 = vld [vmem:[%s160 + $0x90] sm:$0xff]
        %v204 = vld [vmem:[%s160 + $0x98] sm:$0xff]
        %v205 = vld [vmem:[%s160 + $0xa0] sm:$0xff]
        %v206 = vld [vmem:[%s160 + $0xa8] sm:$0xff]
        %v207 = vld [vmem:[%s160 + $0xb0] sm:$0xff]
        %v208 = vld [vmem:[%s160 + $0xb8] sm:$0xff]
        %v209 = vld [vmem:[%s160 + $0xc0] sm:$0xff]
        %v210 = vld [vmem:[%s160 + $0xc8] sm:$0xff]
        %v211 = vld [vmem:[%s160 + $0xd0] sm:$0xff]
        %v212 = vld [vmem:[%s160 + $0xd8] sm:$0xff]
        %v213 = vld [vmem:[%s160 + $0xe0] sm:$0xff]
        %v214 = vld [vmem:[%s160 + $0xe8] sm:$0xff]
        %v215 = vld [vmem:[%s160 + $0xf0] sm:$0xff]
        %v216 = vld [vmem:[%s160 + $0xf8] sm:$0xff]
        %v217 = vld [vmem:[%s160 + $0x100] sm:$0xff]
        %v218 = vld [vmem:[%s160 + $0x108] sm:$0xff]
        %v219 = vld [vmem:[%s160 + $0x110] sm:$0xff]
        %v220 = vld [vmem:[%s160 + $0x118] sm:$0xff]
        %v221 = vld [vmem:[%s160 + $0x120] sm:$0xff]
        %v222 = vld [vmem:[%s160 + $0x128] sm:$0xff]
        %v223 = vld [vmem:[%s160 + $0x130] sm:$0xff]
        %v224 = vld [vmem:[%s160 + $0x138] sm:$0xff]
        %v225 = vld [vmem:[%s160 + $0x140] sm:$0xff]
        %v226 = vld [vmem:[%s160 + $0x148] sm:$0xff]
        %v227 = vld [vmem:[%s160 + $0x150] sm:$0xff]
        %v228 = vld [vmem:[%s160 + $0x158] sm:$0xff]
        %v229 = vld [vmem:[%s160 + $0x160] sm:$0xff]
        %v230 = vld [vmem:[%s160 + $0x168] sm:$0xff]
        %v231 = vld [vmem:[%s160 + $0x170] sm:$0xff]
        %v232 = vld [vmem:[%s160 + $0x178] sm:$0xff]
        %v233 = vld [vmem:[%s160 + $0x180] sm:$0xff]
        %v234 = vld [vmem:[%s160 + $0x188] sm:$0xff]
        %v235 = vld [vmem:[%s160 + $0x190] sm:$0xff]
        %v236 = vld [vmem:[%s160 + $0x198] sm:$0xff]
        %v237 = vld [vmem:[%s160 + $0x1a0] sm:$0xff]
        %v238 = vld [vmem:[%s160 + $0x1a8] sm:$0xff]
        %v239 = vld [vmem:[%s160 + $0x1b0] sm:$0xff]
        %v240 = vld [vmem:[%s160 + $0x1b8] sm:$0xff]
        %v241 = vld [vmem:[%s160 + $0x1c0] sm:$0xff]
        %v242 = vld [vmem:[%s160 + $0x1c8] sm:$0xff]
        %v243 = vld [vmem:[%s160 + $0x1d0] sm:$0xff]
        %v244 = vld [vmem:[%s160 + $0x1d8] sm:$0xff]
        %v245 = vld [vmem:[%s160 + $0x1e0] sm:$0xff]
        %v246 = vld [vmem:[%s160 + $0x1e8] sm:$0xff]
        %v247 = vld [vmem:[%s160 + $0x1f0] sm:$0xff]
        %v248 = vld [vmem:[%s160 + $0x1f8] sm:$0xff]
        %v249 = vld [vmem:[%s160 + $0x200] sm:$0xff]
        %v250 = vld [vmem:[%s160 + $0x208] sm:$0xff]
        %v251 = vld [vmem:[%s160 + $0x210] sm:$0xff]
        %v252 = vld [vmem:[%s160 + $0x218] sm:$0xff]
        %v253 = vld [vmem:[%s160 + $0x220] sm:$0xff]
        %v254 = vld [vmem:[%s160 + $0x228] sm:$0xff]
        %v255 = vld [vmem:[%s160 + $0x230] sm:$0xff]
        %v256 = vld [vmem:[%s160 + $0x238] sm:$0xff]
        %v257 = vld [vmem:[%s160 + $0x240] sm:$0xff]
        %v258 = vld [vmem:[%s160 + $0x248] sm:$0xff]
        %v259 = vld [vmem:[%s160 + $0x250] sm:$0xff]
        %v260 = vld [vmem:[%s160 + $0x258] sm:$0xff]
        %v261 = vld [vmem:[%s160 + $0x260] sm:$0xff]
        %v262 = vld [vmem:[%s160 + $0x268] sm:$0xff]
        %v263 = vld [vmem:[%s160 + $0x270] sm:$0xff]
        %v264 = vld [vmem:[%s160 + $0x278] sm:$0xff]
        %v265 = vld [vmem:[%s160 + $0x280] sm:$0xff]
        %v266 = vld [vmem:[%s160 + $0x288] sm:$0xff]
        %v267 = vld [vmem:[%s160 + $0x290] sm:$0xff]
        %v268 = vld [vmem:[%s160 + $0x298] sm:$0xff]
        %v269 = vld [vmem:[%s160 + $0x2a0] sm:$0xff]
        %v270 = vld [vmem:[%s160 + $0x2a8] sm:$0xff]
        %v271 = vld [vmem:[%s160 + $0x2b0] sm:$0xff]
        %v272 = vld [vmem:[%s160 + $0x2b8] sm:$0xff]
        %v273 = vld [vmem:[%s160 + $0x2c0] sm:$0xff]
        %v274 = vld [vmem:[%s160 + $0x2c8] sm:$0xff]
        %v275 = vld [vmem:[%s160 + $0x2d0] sm:$0xff]
        %v276 = vld [vmem:[%s160 + $0x2d8] sm:$0xff]
        %v277 = vld [vmem:[%s160 + $0x2e0] sm:$0xff]
        %v278 = vld [vmem:[%s160 + $0x2e8] sm:$0xff]
        %v279 = vld [vmem:[%s160 + $0x2f0] sm:$0xff]
        %v280 = vld [vmem:[%s160 + $0x2f8] sm:$0xff]
        %v281 = vld [vmem:[%s160 + $0x300] sm:$0xff]
        %v282 = vld [vmem:[%s160 + $0x308] sm:$0xff]
        %v283 = vld [vmem:[%s160 + $0x310] sm:$0xff]
        %v284 = vld [vmem:[%s160 + $0x318] sm:$0xff]
        %v285 = vld [vmem:[%s160 + $0x320] sm:$0xff]
        %v286 = vld [vmem:[%s160 + $0x328] sm:$0xff]
        %v287 = vld [vmem:[%s160 + $0x330] sm:$0xff]
        %v288 = vld [vmem:[%s160 + $0x338] sm:$0xff]
        %v289 = vld [vmem:[%s160 + $0x340] sm:$0xff]
        %v290 = vld [vmem:[%s160 + $0x348] sm:$0xff]
        %v291 = vld [vmem:[%s160 + $0x350] sm:$0xff]
        %v292 = vld [vmem:[%s160 + $0x358] sm:$0xff]
        %v293 = vld [vmem:[%s160 + $0x360] sm:$0xff]
        %v294 = vld [vmem:[%s160 + $0x368] sm:$0xff]
        %v295 = vld [vmem:[%s160 + $0x370] sm:$0xff]
        %v296 = vld [vmem:[%s160 + $0x378] sm:$0xff]
        %v297 = vld [vmem:[%s160 + $0x380] sm:$0xff]
        %v298 = vld [vmem:[%s160 + $0x388] sm:$0xff]
        %v299 = vld [vmem:[%s160 + $0x390] sm:$0xff]
        %v300 = vld [vmem:[%s160 + $0x398] sm:$0xff]
        %v301 = vld [vmem:[%s160 + $0x3a0] sm:$0xff]
        %v302 = vld [vmem:[%s160 + $0x3a8] sm:$0xff]
        %v303 = vld [vmem:[%s160 + $0x3b0] sm:$0xff]
        %v304 = vld [vmem:[%s160 + $0x3b8] sm:$0xff]
        %v305 = vld [vmem:[%s160 + $0x3c0] sm:$0xff]
        %v306 = vld [vmem:[%s160 + $0x3c8] sm:$0xff]
        %v307 = vld [vmem:[%s160 + $0x3d0] sm:$0xff]
        %v308 = vld [vmem:[%s160 + $0x3d8] sm:$0xff]
        %v309 = vld [vmem:[%s160 + $0x3e0] sm:$0xff]
        %v310 = vld [vmem:[%s160 + $0x3e8] sm:$0xff]
        %v311 = vld [vmem:[%s160 + $0x3f0] sm:$0xff]
        %v312 = vld [vmem:[%s160 + $0x3f8] sm:$0xff]
        %v313 = vld [vmem:[%s160 + $0x400] sm:$0xff]
        %v314 = vld [vmem:[%s160 + $0x408] sm:$0xff]
        %v315 = vld [vmem:[%s160 + $0x410] sm:$0xff]
        %v316 = vld [vmem:[%s160 + $0x418] sm:$0xff]
        %v317 = vld [vmem:[%s160 + $0x420] sm:$0xff]
        %v318 = vld [vmem:[%s160 + $0x428] sm:$0xff]
        %v319 = vld [vmem:[%s160 + $0x430] sm:$0xff]
        %v320 = vld [vmem:[%s160 + $0x438] sm:$0xff]
        %v321 = vld [vmem:[%s160 + $0x440] sm:$0xff]
        %v322 = vld [vmem:[%s160 + $0x448] sm:$0xff]
        %v323 = vld [vmem:[%s160 + $0x450] sm:$0xff]
        %v324 = vld [vmem:[%s160 + $0x458] sm:$0xff]
        %v325 = vld [vmem:[%s160 + $0x460] sm:$0xff]
        %v326 = vld [vmem:[%s160 + $0x468] sm:$0xff]
        %v327 = vld [vmem:[%s160 + $0x470] sm:$0xff]
        %v328 = vld [vmem:[%s160 + $0x478] sm:$0xff]
        %v329 = vld [vmem:[%s160 + $0x480] sm:$0xff]
        %v330 = vld [vmem:[%s160 + $0x488] sm:$0xff]
        %v331 = vld [vmem:[%s160 + $0x490] sm:$0xff]
        %v332 = vld [vmem:[%s160 + $0x498] sm:$0xff]
        %v333 = vld [vmem:[%s160 + $0x4a0] sm:$0xff]
        %v334 = vld [vmem:[%s160 + $0x4a8] sm:$0xff]
        %v335 = vld [vmem:[%s160 + $0x4b0] sm:$0xff]
        %v336 = vld [vmem:[%s160 + $0x4b8] sm:$0xff]
        %v337 = vld [vmem:[%s160 + $0x4c0] sm:$0xff]
        %v338 = vld [vmem:[%s160 + $0x4c8] sm:$0xff]
        %v339 = vld [vmem:[%s160 + $0x4d0] sm:$0xff]
        %v340 = vld [vmem:[%s160 + $0x4d8] sm:$0xff]
        %v341 = vld [vmem:[%s160 + $0x4e0] sm:$0xff]
        %v342 = vld [vmem:[%s160 + $0x4e8] sm:$0xff]
        %v343 = vld [vmem:[%s160 + $0x4f0] sm:$0xff]
        %v344 = vld [vmem:[%s160 + $0x4f8] sm:$0xff]
        %v345 = vld [vmem:[%s160 + $0x500] sm:$0xff]
        %v346 = vld [vmem:[%s160 + $0x508] sm:$0xff]
        %v347 = vld [vmem:[%s160 + $0x510] sm:$0xff]
        %v348 = vld [vmem:[%s160 + $0x518] sm:$0xff]
        %v349 = vld [vmem:[%s160 + $0x520] sm:$0xff]
        %v350 = vld [vmem:[%s160 + $0x528] sm:$0xff]
        %v351 = vld [vmem:[%s160 + $0x530] sm:$0xff]
        %v352 = vld [vmem:[%s160 + $0x538] sm:$0xff]
        %v353 = vld [vmem:[%s160 + $0x540] sm:$0xff]
        %v354 = vld [vmem:[%s160 + $0x548] sm:$0xff]
        %v355 = vld [vmem:[%s160 + $0x550] sm:$0xff]
        %v356 = vld [vmem:[%s160 + $0x558] sm:$0xff]
        %v357 = vld [vmem:[%s160 + $0x560] sm:$0xff]
        %v358 = vld [vmem:[%s160 + $0x568] sm:$0xff]
        %v359 = vld [vmem:[%s160 + $0x570] sm:$0xff]
        %v360 = vld [vmem:[%s160 + $0x578] sm:$0xff]
        %v361 = vld [vmem:[%s160 + $0x580] sm:$0xff]
        %v362 = vld [vmem:[%s160 + $0x588] sm:$0xff]
        %v363 = vld [vmem:[%s160 + $0x590] sm:$0xff]
        %v364 = vld [vmem:[%s160 + $0x598] sm:$0xff]
        %v365 = vld [vmem:[%s160 + $0x5a0] sm:$0xff]
        %v366 = vld [vmem:[%s160 + $0x5a8] sm:$0xff]
        %v367 = vld [vmem:[%s160 + $0x5b0] sm:$0xff]
        %v368 = vld [vmem:[%s160 + $0x5b8] sm:$0xff]
        %v369 = vld [vmem:[%s160 + $0x5c0] sm:$0xff]
        %v370 = vld [vmem:[%s160 + $0x5c8] sm:$0xff]
        %v371 = vld [vmem:[%s160 + $0x5d0] sm:$0xff]
        %v372 = vld [vmem:[%s160 + $0x5d8] sm:$0xff]
        %v373 = vld [vmem:[%s160 + $0x5e0] sm:$0xff]
        %v374 = vld [vmem:[%s160 + $0x5e8] sm:$0xff]
        %v375 = vld [vmem:[%s160 + $0x5f0] sm:$0xff]
        %v376 = vld [vmem:[%s160 + $0x5f8] sm:$0xff]
        %v377 = vld [vmem:[%s160 + $0x600] sm:$0xff]
        %v378 = vld [vmem:[%s160 + $0x608] sm:$0xff]
        %v379 = vld [vmem:[%s160 + $0x610] sm:$0xff]
        %v380 = vld [vmem:[%s160 + $0x618] sm:$0xff]
        %v381 = vld [vmem:[%s160 + $0x620] sm:$0xff]
        %v382 = vld [vmem:[%s160 + $0x628] sm:$0xff]
        %v383 = vld [vmem:[%s160 + $0x630] sm:$0xff]
        %v384 = vld [vmem:[%s160 + $0x638] sm:$0xff]
        %v385 = vld [vmem:[%s160 + $0x640] sm:$0xff]
        %v386 = vld [vmem:[%s160 + $0x648] sm:$0xff]
        %v387 = vld [vmem:[%s160 + $0x650] sm:$0xff]
        %v388 = vld [vmem:[%s160 + $0x658] sm:$0xff]
        %v389 = vld [vmem:[%s160 + $0x660] sm:$0xff]
        %v390 = vld [vmem:[%s160 + $0x668] sm:$0xff]
        %v391 = vld [vmem:[%s160 + $0x670] sm:$0xff]
        %v392 = vld [vmem:[%s160 + $0x678] sm:$0xff]
        %v393 = vld [vmem:[%s160 + $0x680] sm:$0xff]
        %v394 = vld [vmem:[%s160 + $0x688] sm:$0xff]
        %v395 = vld [vmem:[%s160 + $0x690] sm:$0xff]
        %v396 = vld [vmem:[%s160 + $0x698] sm:$0xff]
        %v397 = vld [vmem:[%s160 + $0x6a0] sm:$0xff]
        %v398 = vld [vmem:[%s160 + $0x6a8] sm:$0xff]
        %v399 = vld [vmem:[%s160 + $0x6b0] sm:$0xff]
        %v400 = vld [vmem:[%s160 + $0x6b8] sm:$0xff]
        %v401 = vld [vmem:[%s160 + $0x6c0] sm:$0xff]
        %v402 = vld [vmem:[%s160 + $0x6c8] sm:$0xff]
        %v403 = vld [vmem:[%s160 + $0x6d0] sm:$0xff]
        %v404 = vld [vmem:[%s160 + $0x6d8] sm:$0xff]
        %v405 = vld [vmem:[%s160 + $0x6e0] sm:$0xff]
        %v406 = vld [vmem:[%s160 + $0x6e8] sm:$0xff]
        %v407 = vld [vmem:[%s160 + $0x6f0] sm:$0xff]
        %v408 = vld [vmem:[%s160 + $0x6f8] sm:$0xff]
        %v409 = vld [vmem:[%s160 + $0x700] sm:$0xff]
        %v410 = vld [vmem:[%s160 + $0x708] sm:$0xff]
        %v411 = vld [vmem:[%s160 + $0x710] sm:$0xff]
        %v412 = vld [vmem:[%s160 + $0x718] sm:$0xff]
        %v413 = vld [vmem:[%s160 + $0x720] sm:$0xff]
        %v414 = vld [vmem:[%s160 + $0x728] sm:$0xff]
        %v415 = vld [vmem:[%s160 + $0x730] sm:$0xff]
        %v416 = vld [vmem:[%s160 + $0x738] sm:$0xff]
        %v417 = vld [vmem:[%s160 + $0x740] sm:$0xff]
        %v418 = vld [vmem:[%s160 + $0x748] sm:$0xff]
        %v419 = vld [vmem:[%s160 + $0x750] sm:$0xff]
        %v420 = vld [vmem:[%s160 + $0x758] sm:$0xff]
        %v421 = vld [vmem:[%s160 + $0x760] sm:$0xff]
        %v422 = vld [vmem:[%s160 + $0x768] sm:$0xff]
        %v423 = vld [vmem:[%s160 + $0x770] sm:$0xff]
        %v424 = vld [vmem:[%s160 + $0x778] sm:$0xff]
        %v425 = vld [vmem:[%s160 + $0x780] sm:$0xff]
        %v426 = vld [vmem:[%s160 + $0x788] sm:$0xff]
        %v427 = vld [vmem:[%s160 + $0x790] sm:$0xff]
        %v428 = vld [vmem:[%s160 + $0x798] sm:$0xff]
        %v429 = vld [vmem:[%s160 + $0x7a0] sm:$0xff]
        %v430 = vld [vmem:[%s160 + $0x7a8] sm:$0xff]
        %v431 = vld [vmem:[%s160 + $0x7b0] sm:$0xff]
        %v432 = vld [vmem:[%s160 + $0x7b8] sm:$0xff]
        %v433 = vld [vmem:[%s160 + $0x7c0] sm:$0xff]
        %v434 = vld [vmem:[%s160 + $0x7c8] sm:$0xff]
        %v435 = vld [vmem:[%s160 + $0x7d0] sm:$0xff]
        %v436 = vld [vmem:[%s160 + $0x7d8] sm:$0xff]
        %v437 = vld [vmem:[%s160 + $0x7e0] sm:$0xff]
        %v438 = vld [vmem:[%s160 + $0x7e8] sm:$0xff]
        %v439 = vld [vmem:[%s160 + $0x7f0] sm:$0xff]
        %v440 = vld [vmem:[%s160 + $0x7f8] sm:$0xff]
        %v441 = vld [vmem:[%s1] sm:$0xff]
        %v442 = vld [vmem:[%s1 + $0x8] sm:$0xff]
        %v443 = vld [vmem:[%s1 + $0x10] sm:$0xff]
        %v444 = vld [vmem:[%s1 + $0x18] sm:$0xff]
        %446 = vset.pattern.permute.xlu0 0
        %447 = vperm.xlu0 %446, %v441
        %v448 = vpop.permute.xlu0 %447
        %451 = vset.pattern.permute.xlu0 0
        %452 = vperm.xlu0 %451, %v442
        %v453 = vpop.permute.xlu0 %452
        %456 = vset.pattern.permute.xlu0 0
        %457 = vperm.xlu0 %456, %v443
        %v458 = vpop.permute.xlu0 %457
        %461 = vset.pattern.permute.xlu0 0
        %462 = vperm.xlu0 %461, %v444
        %v463 = vpop.permute.xlu0 %462
        %v465 = vadd.f32 %v185, %v448
        %v466 = vadd.f32 %v186, %v448
        %v467 = vadd.f32 %v187, %v448
        %v468 = vadd.f32 %v188, %v448
        %v469 = vadd.f32 %v189, %v448
        %v470 = vadd.f32 %v190, %v448
        %v471 = vadd.f32 %v191, %v448
        %v472 = vadd.f32 %v192, %v448
        %v473 = vadd.f32 %v193, %v448
        %v474 = vadd.f32 %v194, %v448
        %v475 = vadd.f32 %v195, %v448
        %v476 = vadd.f32 %v196, %v448
        %v477 = vadd.f32 %v197, %v448
        %v478 = vadd.f32 %v198, %v448
        %v479 = vadd.f32 %v199, %v448
        %v480 = vadd.f32 %v200, %v448
        %v481 = vadd.f32 %v201, %v448
        %v482 = vadd.f32 %v202, %v448
        %v483 = vadd.f32 %v203, %v448
        %v484 = vadd.f32 %v204, %v448
        %v485 = vadd.f32 %v205, %v448
        %v486 = vadd.f32 %v206, %v448
        %v487 = vadd.f32 %v207, %v448
        %v488 = vadd.f32 %v208, %v448
        %v489 = vadd.f32 %v209, %v448
        %v490 = vadd.f32 %v210, %v448
        %v491 = vadd.f32 %v211, %v448
        %v492 = vadd.f32 %v212, %v448
        %v493 = vadd.f32 %v213, %v448
        %v494 = vadd.f32 %v214, %v448
        %v495 = vadd.f32 %v215, %v448
        %v496 = vadd.f32 %v216, %v448
        %v497 = vadd.f32 %v217, %v448
        %v498 = vadd.f32 %v218, %v448
        %v499 = vadd.f32 %v219, %v448
        %v500 = vadd.f32 %v220, %v448
        %v501 = vadd.f32 %v221, %v448
        %v502 = vadd.f32 %v222, %v448
        %v503 = vadd.f32 %v223, %v448
        %v504 = vadd.f32 %v224, %v448
        %v505 = vadd.f32 %v225, %v448
        %v506 = vadd.f32 %v226, %v448
        %v507 = vadd.f32 %v227, %v448
        %v508 = vadd.f32 %v228, %v448
        %v509 = vadd.f32 %v229, %v448
        %v510 = vadd.f32 %v230, %v448
        %v511 = vadd.f32 %v231, %v448
        %v512 = vadd.f32 %v232, %v448
        %v513 = vadd.f32 %v233, %v448
        %v514 = vadd.f32 %v234, %v448
        %v515 = vadd.f32 %v235, %v448
        %v516 = vadd.f32 %v236, %v448
        %v517 = vadd.f32 %v237, %v448
        %v518 = vadd.f32 %v238, %v448
        %v519 = vadd.f32 %v239, %v448
        %v520 = vadd.f32 %v240, %v448
        %v521 = vadd.f32 %v241, %v448
        %v522 = vadd.f32 %v242, %v448
        %v523 = vadd.f32 %v243, %v448
        %v524 = vadd.f32 %v244, %v448
        %v525 = vadd.f32 %v245, %v448
        %v526 = vadd.f32 %v246, %v448
        %v527 = vadd.f32 %v247, %v448
        %v528 = vadd.f32 %v248, %v448
        %v529 = vadd.f32 %v249, %v453
        %v530 = vadd.f32 %v250, %v453
        %v531 = vadd.f32 %v251, %v453
        %v532 = vadd.f32 %v252, %v453
        %v533 = vadd.f32 %v253, %v453
        %v534 = vadd.f32 %v254, %v453
        %v535 = vadd.f32 %v255, %v453
        %v536 = vadd.f32 %v256, %v453
        %v537 = vadd.f32 %v257, %v453
        %v538 = vadd.f32 %v258, %v453
        %v539 = vadd.f32 %v259, %v453
        %v540 = vadd.f32 %v260, %v453
        %v541 = vadd.f32 %v261, %v453
        %v542 = vadd.f32 %v262, %v453
        %v543 = vadd.f32 %v263, %v453
        %v544 = vadd.f32 %v264, %v453
        %v545 = vadd.f32 %v265, %v453
        %v546 = vadd.f32 %v266, %v453
        %v547 = vadd.f32 %v267, %v453
        %v548 = vadd.f32 %v268, %v453
        %v549 = vadd.f32 %v269, %v453
        %v550 = vadd.f32 %v270, %v453
        %v551 = vadd.f32 %v271, %v453
        %v552 = vadd.f32 %v272, %v453
        %v553 = vadd.f32 %v273, %v453
        %v554 = vadd.f32 %v274, %v453
        %v555 = vadd.f32 %v275, %v453
        %v556 = vadd.f32 %v276, %v453
        %v557 = vadd.f32 %v277, %v453
        %v558 = vadd.f32 %v278, %v453
        %v559 = vadd.f32 %v279, %v453
        %v560 = vadd.f32 %v280, %v453
        %v561 = vadd.f32 %v281, %v453
        %v562 = vadd.f32 %v282, %v453
        %v563 = vadd.f32 %v283, %v453
        %v564 = vadd.f32 %v284, %v453
        %v565 = vadd.f32 %v285, %v453
        %v566 = vadd.f32 %v286, %v453
        %v567 = vadd.f32 %v287, %v453
        %v568 = vadd.f32 %v288, %v453
        %v569 = vadd.f32 %v289, %v453
        %v570 = vadd.f32 %v290, %v453
        %v571 = vadd.f32 %v291, %v453
        %v572 = vadd.f32 %v292, %v453
        %v573 = vadd.f32 %v293, %v453
        %v574 = vadd.f32 %v294, %v453
        %v575 = vadd.f32 %v295, %v453
        %v576 = vadd.f32 %v296, %v453
        %v577 = vadd.f32 %v297, %v453
        %v578 = vadd.f32 %v298, %v453
        %v579 = vadd.f32 %v299, %v453
        %v580 = vadd.f32 %v300, %v453
        %v581 = vadd.f32 %v301, %v453
        %v582 = vadd.f32 %v302, %v453
        %v583 = vadd.f32 %v303, %v453
        %v584 = vadd.f32 %v304, %v453
        %v585 = vadd.f32 %v305, %v453
        %v586 = vadd.f32 %v306, %v453
        %v587 = vadd.f32 %v307, %v453
        %v588 = vadd.f32 %v308, %v453
        %v589 = vadd.f32 %v309, %v453
        %v590 = vadd.f32 %v310, %v453
        %v591 = vadd.f32 %v311, %v453
        %v592 = vadd.f32 %v312, %v453
        %v593 = vadd.f32 %v313, %v458
        %v594 = vadd.f32 %v314, %v458
        %v595 = vadd.f32 %v315, %v458
        %v596 = vadd.f32 %v316, %v458
        %v597 = vadd.f32 %v317, %v458
        %v598 = vadd.f32 %v318, %v458
        %v599 = vadd.f32 %v319, %v458
        %v600 = vadd.f32 %v320, %v458
        %v601 = vadd.f32 %v321, %v458
        %v602 = vadd.f32 %v322, %v458
        %v603 = vadd.f32 %v323, %v458
        %v604 = vadd.f32 %v324, %v458
        %v605 = vadd.f32 %v325, %v458
        %v606 = vadd.f32 %v326, %v458
        %v607 = vadd.f32 %v327, %v458
        %v608 = vadd.f32 %v328, %v458
        %v609 = vadd.f32 %v329, %v458
        %v610 = vadd.f32 %v330, %v458
        %v611 = vadd.f32 %v331, %v458
        %v612 = vadd.f32 %v332, %v458
        %v613 = vadd.f32 %v333, %v458
        %v614 = vadd.f32 %v334, %v458
        %v615 = vadd.f32 %v335, %v458
        %v616 = vadd.f32 %v336, %v458
        %v617 = vadd.f32 %v337, %v458
        %v618 = vadd.f32 %v338, %v458
        %v619 = vadd.f32 %v339, %v458
        %v620 = vadd.f32 %v340, %v458
        %v621 = vadd.f32 %v341, %v458
        %v622 = vadd.f32 %v342, %v458
        %v623 = vadd.f32 %v343, %v458
        %v624 = vadd.f32 %v344, %v458
        %v625 = vadd.f32 %v345, %v458
        %v626 = vadd.f32 %v346, %v458
        %v627 = vadd.f32 %v347, %v458
        %v628 = vadd.f32 %v348, %v458
        %v629 = vadd.f32 %v349, %v458
        %v630 = vadd.f32 %v350, %v458
        %v631 = vadd.f32 %v351, %v458
        %v632 = vadd.f32 %v352, %v458
        %v633 = vadd.f32 %v353, %v458
        %v634 = vadd.f32 %v354, %v458
        %v635 = vadd.f32 %v355, %v458
        %v636 = vadd.f32 %v356, %v458
        %v637 = vadd.f32 %v357, %v458
        %v638 = vadd.f32 %v358, %v458
        %v639 = vadd.f32 %v359, %v458
        %v640 = vadd.f32 %v360, %v458
        %v641 = vadd.f32 %v361, %v458
        %v642 = vadd.f32 %v362, %v458
        %v643 = vadd.f32 %v363, %v458
        %v644 = vadd.f32 %v364, %v458
        %v645 = vadd.f32 %v365, %v458
        %v646 = vadd.f32 %v366, %v458
        %v647 = vadd.f32 %v367, %v458
        %v648 = vadd.f32 %v368, %v458
        %v649 = vadd.f32 %v369, %v458
        %v650 = vadd.f32 %v370, %v458
        %v651 = vadd.f32 %v371, %v458
        %v652 = vadd.f32 %v372, %v458
        %v653 = vadd.f32 %v373, %v458
        %v654 = vadd.f32 %v374, %v458
        %v655 = vadd.f32 %v375, %v458
        %v656 = vadd.f32 %v376, %v458
        %v657 = vadd.f32 %v377, %v463
        %v658 = vadd.f32 %v378, %v463
        %v659 = vadd.f32 %v379, %v463
        %v660 = vadd.f32 %v380, %v463
        %v661 = vadd.f32 %v381, %v463
        %v662 = vadd.f32 %v382, %v463
        %v663 = vadd.f32 %v383, %v463
        %v664 = vadd.f32 %v384, %v463
        %v665 = vadd.f32 %v385, %v463
        %v666 = vadd.f32 %v386, %v463
        %v667 = vadd.f32 %v387, %v463
        %v668 = vadd.f32 %v388, %v463
        %v669 = vadd.f32 %v389, %v463
        %v670 = vadd.f32 %v390, %v463
        %v671 = vadd.f32 %v391, %v463
        %v672 = vadd.f32 %v392, %v463
        %v673 = vadd.f32 %v393, %v463
        %v674 = vadd.f32 %v394, %v463
        %v675 = vadd.f32 %v395, %v463
        %v676 = vadd.f32 %v396, %v463
        %v677 = vadd.f32 %v397, %v463
        %v678 = vadd.f32 %v398, %v463
        %v679 = vadd.f32 %v399, %v463
        %v680 = vadd.f32 %v400, %v463
        %v681 = vadd.f32 %v401, %v463
        %v682 = vadd.f32 %v402, %v463
        %v683 = vadd.f32 %v403, %v463
        %v684 = vadd.f32 %v404, %v463
        %v685 = vadd.f32 %v405, %v463
        %v686 = vadd.f32 %v406, %v463
        %v687 = vadd.f32 %v407, %v463
        %v688 = vadd.f32 %v408, %v463
        %v689 = vadd.f32 %v409, %v463
        %v690 = vadd.f32 %v410, %v463
        %v691 = vadd.f32 %v411, %v463
        %v692 = vadd.f32 %v412, %v463
        %v693 = vadd.f32 %v413, %v463
        %v694 = vadd.f32 %v414, %v463
        %v695 = vadd.f32 %v415, %v463
        %v696 = vadd.f32 %v416, %v463
        %v697 = vadd.f32 %v417, %v463
        %v698 = vadd.f32 %v418, %v463
        %v699 = vadd.f32 %v419, %v463
        %v700 = vadd.f32 %v420, %v463
        %v701 = vadd.f32 %v421, %v463
        %v702 = vadd.f32 %v422, %v463
        %v703 = vadd.f32 %v423, %v463
        %v704 = vadd.f32 %v424, %v463
        %v705 = vadd.f32 %v425, %v463
        %v706 = vadd.f32 %v426, %v463
        %v707 = vadd.f32 %v427, %v463
        %v708 = vadd.f32 %v428, %v463
        %v709 = vadd.f32 %v429, %v463
        %v710 = vadd.f32 %v430, %v463
        %v711 = vadd.f32 %v431, %v463
        %v712 = vadd.f32 %v432, %v463
        %v713 = vadd.f32 %v433, %v463
        %v714 = vadd.f32 %v434, %v463
        %v715 = vadd.f32 %v435, %v463
        %v716 = vadd.f32 %v436, %v463
        %v717 = vadd.f32 %v437, %v463
        %v718 = vadd.f32 %v438, %v463
        %v719 = vadd.f32 %v439, %v463
        %v720 = vadd.f32 %v440, %v463
        %721 = vst [vmem:[%s180] sm:$0xff] %v465
        %722 = vst [vmem:[%s180 + $0x8] sm:$0xff] %v466
        %723 = vst [vmem:[%s180 + $0x10] sm:$0xff] %v467
        %724 = vst [vmem:[%s180 + $0x18] sm:$0xff] %v468
        %725 = vst [vmem:[%s180 + $0x20] sm:$0xff] %v469
        %726 = vst [vmem:[%s180 + $0x28] sm:$0xff] %v470
        %727 = vst [vmem:[%s180 + $0x30] sm:$0xff] %v471
        %728 = vst [vmem:[%s180 + $0x38] sm:$0xff] %v472
        %729 = vst [vmem:[%s180 + $0x40] sm:$0xff] %v473
        %730 = vst [vmem:[%s180 + $0x48] sm:$0xff] %v474
        %731 = vst [vmem:[%s180 + $0x50] sm:$0xff] %v475
        %732 = vst [vmem:[%s180 + $0x58] sm:$0xff] %v476
        %733 = vst [vmem:[%s180 + $0x60] sm:$0xff] %v477
        %734 = vst [vmem:[%s180 + $0x68] sm:$0xff] %v478
        %735 = vst [vmem:[%s180 + $0x70] sm:$0xff] %v479
        %736 = vst [vmem:[%s180 + $0x78] sm:$0xff] %v480
        %737 = vst [vmem:[%s180 + $0x80] sm:$0xff] %v481
        %738 = vst [vmem:[%s180 + $0x88] sm:$0xff] %v482
        %739 = vst [vmem:[%s180 + $0x90] sm:$0xff] %v483
        %740 = vst [vmem:[%s180 + $0x98] sm:$0xff] %v484
        %741 = vst [vmem:[%s180 + $0xa0] sm:$0xff] %v485
        %742 = vst [vmem:[%s180 + $0xa8] sm:$0xff] %v486
        %743 = vst [vmem:[%s180 + $0xb0] sm:$0xff] %v487
        %744 = vst [vmem:[%s180 + $0xb8] sm:$0xff] %v488
        %745 = vst [vmem:[%s180 + $0xc0] sm:$0xff] %v489
        %746 = vst [vmem:[%s180 + $0xc8] sm:$0xff] %v490
        %747 = vst [vmem:[%s180 + $0xd0] sm:$0xff] %v491
        %748 = vst [vmem:[%s180 + $0xd8] sm:$0xff] %v492
        %749 = vst [vmem:[%s180 + $0xe0] sm:$0xff] %v493
        %750 = vst [vmem:[%s180 + $0xe8] sm:$0xff] %v494
        %751 = vst [vmem:[%s180 + $0xf0] sm:$0xff] %v495
        %752 = vst [vmem:[%s180 + $0xf8] sm:$0xff] %v496
        %753 = vst [vmem:[%s180 + $0x100] sm:$0xff] %v497
        %754 = vst [vmem:[%s180 + $0x108] sm:$0xff] %v498
        %755 = vst [vmem:[%s180 + $0x110] sm:$0xff] %v499
        %756 = vst [vmem:[%s180 + $0x118] sm:$0xff] %v500
        %757 = vst [vmem:[%s180 + $0x120] sm:$0xff] %v501
        %758 = vst [vmem:[%s180 + $0x128] sm:$0xff] %v502
        %759 = vst [vmem:[%s180 + $0x130] sm:$0xff] %v503
        %760 = vst [vmem:[%s180 + $0x138] sm:$0xff] %v504
        %761 = vst [vmem:[%s180 + $0x140] sm:$0xff] %v505
        %762 = vst [vmem:[%s180 + $0x148] sm:$0xff] %v506
        %763 = vst [vmem:[%s180 + $0x150] sm:$0xff] %v507
        %764 = vst [vmem:[%s180 + $0x158] sm:$0xff] %v508
        %765 = vst [vmem:[%s180 + $0x160] sm:$0xff] %v509
        %766 = vst [vmem:[%s180 + $0x168] sm:$0xff] %v510
        %767 = vst [vmem:[%s180 + $0x170] sm:$0xff] %v511
        %768 = vst [vmem:[%s180 + $0x178] sm:$0xff] %v512
        %769 = vst [vmem:[%s180 + $0x180] sm:$0xff] %v513
        %770 = vst [vmem:[%s180 + $0x188] sm:$0xff] %v514
        %771 = vst [vmem:[%s180 + $0x190] sm:$0xff] %v515
        %772 = vst [vmem:[%s180 + $0x198] sm:$0xff] %v516
        %773 = vst [vmem:[%s180 + $0x1a0] sm:$0xff] %v517
        %774 = vst [vmem:[%s180 + $0x1a8] sm:$0xff] %v518
        %775 = vst [vmem:[%s180 + $0x1b0] sm:$0xff] %v519
        %776 = vst [vmem:[%s180 + $0x1b8] sm:$0xff] %v520
        %777 = vst [vmem:[%s180 + $0x1c0] sm:$0xff] %v521
        %778 = vst [vmem:[%s180 + $0x1c8] sm:$0xff] %v522
        %779 = vst [vmem:[%s180 + $0x1d0] sm:$0xff] %v523
        %780 = vst [vmem:[%s180 + $0x1d8] sm:$0xff] %v524
        %781 = vst [vmem:[%s180 + $0x1e0] sm:$0xff] %v525
        %782 = vst [vmem:[%s180 + $0x1e8] sm:$0xff] %v526
        %783 = vst [vmem:[%s180 + $0x1f0] sm:$0xff] %v527
        %784 = vst [vmem:[%s180 + $0x1f8] sm:$0xff] %v528
        %785 = vst [vmem:[%s180 + $0x200] sm:$0xff] %v529
        %786 = vst [vmem:[%s180 + $0x208] sm:$0xff] %v530
        %787 = vst [vmem:[%s180 + $0x210] sm:$0xff] %v531
        %788 = vst [vmem:[%s180 + $0x218] sm:$0xff] %v532
        %789 = vst [vmem:[%s180 + $0x220] sm:$0xff] %v533
        %790 = vst [vmem:[%s180 + $0x228] sm:$0xff] %v534
        %791 = vst [vmem:[%s180 + $0x230] sm:$0xff] %v535
        %792 = vst [vmem:[%s180 + $0x238] sm:$0xff] %v536
        %793 = vst [vmem:[%s180 + $0x240] sm:$0xff] %v537
        %794 = vst [vmem:[%s180 + $0x248] sm:$0xff] %v538
        %795 = vst [vmem:[%s180 + $0x250] sm:$0xff] %v539
        %796 = vst [vmem:[%s180 + $0x258] sm:$0xff] %v540
        %797 = vst [vmem:[%s180 + $0x260] sm:$0xff] %v541
        %798 = vst [vmem:[%s180 + $0x268] sm:$0xff] %v542
        %799 = vst [vmem:[%s180 + $0x270] sm:$0xff] %v543
        %800 = vst [vmem:[%s180 + $0x278] sm:$0xff] %v544
        %801 = vst [vmem:[%s180 + $0x280] sm:$0xff] %v545
        %802 = vst [vmem:[%s180 + $0x288] sm:$0xff] %v546
        %803 = vst [vmem:[%s180 + $0x290] sm:$0xff] %v547
        %804 = vst [vmem:[%s180 + $0x298] sm:$0xff] %v548
        %805 = vst [vmem:[%s180 + $0x2a0] sm:$0xff] %v549
        %806 = vst [vmem:[%s180 + $0x2a8] sm:$0xff] %v550
        %807 = vst [vmem:[%s180 + $0x2b0] sm:$0xff] %v551
        %808 = vst [vmem:[%s180 + $0x2b8] sm:$0xff] %v552
        %809 = vst [vmem:[%s180 + $0x2c0] sm:$0xff] %v553
        %810 = vst [vmem:[%s180 + $0x2c8] sm:$0xff] %v554
        %811 = vst [vmem:[%s180 + $0x2d0] sm:$0xff] %v555
        %812 = vst [vmem:[%s180 + $0x2d8] sm:$0xff] %v556
        %813 = vst [vmem:[%s180 + $0x2e0] sm:$0xff] %v557
        %814 = vst [vmem:[%s180 + $0x2e8] sm:$0xff] %v558
        %815 = vst [vmem:[%s180 + $0x2f0] sm:$0xff] %v559
        %816 = vst [vmem:[%s180 + $0x2f8] sm:$0xff] %v560
        %817 = vst [vmem:[%s180 + $0x300] sm:$0xff] %v561
        %818 = vst [vmem:[%s180 + $0x308] sm:$0xff] %v562
        %819 = vst [vmem:[%s180 + $0x310] sm:$0xff] %v563
        %820 = vst [vmem:[%s180 + $0x318] sm:$0xff] %v564
        %821 = vst [vmem:[%s180 + $0x320] sm:$0xff] %v565
        %822 = vst [vmem:[%s180 + $0x328] sm:$0xff] %v566
        %823 = vst [vmem:[%s180 + $0x330] sm:$0xff] %v567
        %824 = vst [vmem:[%s180 + $0x338] sm:$0xff] %v568
        %825 = vst [vmem:[%s180 + $0x340] sm:$0xff] %v569
        %826 = vst [vmem:[%s180 + $0x348] sm:$0xff] %v570
        %827 = vst [vmem:[%s180 + $0x350] sm:$0xff] %v571
        %828 = vst [vmem:[%s180 + $0x358] sm:$0xff] %v572
        %829 = vst [vmem:[%s180 + $0x360] sm:$0xff] %v573
        %830 = vst [vmem:[%s180 + $0x368] sm:$0xff] %v574
        %831 = vst [vmem:[%s180 + $0x370] sm:$0xff] %v575
        %832 = vst [vmem:[%s180 + $0x378] sm:$0xff] %v576
        %833 = vst [vmem:[%s180 + $0x380] sm:$0xff] %v577
        %834 = vst [vmem:[%s180 + $0x388] sm:$0xff] %v578
        %835 = vst [vmem:[%s180 + $0x390] sm:$0xff] %v579
        %836 = vst [vmem:[%s180 + $0x398] sm:$0xff] %v580
        %837 = vst [vmem:[%s180 + $0x3a0] sm:$0xff] %v581
        %838 = vst [vmem:[%s180 + $0x3a8] sm:$0xff] %v582
        %839 = vst [vmem:[%s180 + $0x3b0] sm:$0xff] %v583
        %840 = vst [vmem:[%s180 + $0x3b8] sm:$0xff] %v584
        %841 = vst [vmem:[%s180 + $0x3c0] sm:$0xff] %v585
        %842 = vst [vmem:[%s180 + $0x3c8] sm:$0xff] %v586
        %843 = vst [vmem:[%s180 + $0x3d0] sm:$0xff] %v587
        %844 = vst [vmem:[%s180 + $0x3d8] sm:$0xff] %v588
        %845 = vst [vmem:[%s180 + $0x3e0] sm:$0xff] %v589
        %846 = vst [vmem:[%s180 + $0x3e8] sm:$0xff] %v590
        %847 = vst [vmem:[%s180 + $0x3f0] sm:$0xff] %v591
        %848 = vst [vmem:[%s180 + $0x3f8] sm:$0xff] %v592
        %849 = vst [vmem:[%s180 + $0x400] sm:$0xff] %v593
        %850 = vst [vmem:[%s180 + $0x408] sm:$0xff] %v594
        %851 = vst [vmem:[%s180 + $0x410] sm:$0xff] %v595
        %852 = vst [vmem:[%s180 + $0x418] sm:$0xff] %v596
        %853 = vst [vmem:[%s180 + $0x420] sm:$0xff] %v597
        %854 = vst [vmem:[%s180 + $0x428] sm:$0xff] %v598
        %855 = vst [vmem:[%s180 + $0x430] sm:$0xff] %v599
        %856 = vst [vmem:[%s180 + $0x438] sm:$0xff] %v600
        %857 = vst [vmem:[%s180 + $0x440] sm:$0xff] %v601
        %858 = vst [vmem:[%s180 + $0x448] sm:$0xff] %v602
        %859 = vst [vmem:[%s180 + $0x450] sm:$0xff] %v603
        %860 = vst [vmem:[%s180 + $0x458] sm:$0xff] %v604
        %861 = vst [vmem:[%s180 + $0x460] sm:$0xff] %v605
        %862 = vst [vmem:[%s180 + $0x468] sm:$0xff] %v606
        %863 = vst [vmem:[%s180 + $0x470] sm:$0xff] %v607
        %864 = vst [vmem:[%s180 + $0x478] sm:$0xff] %v608
        %865 = vst [vmem:[%s180 + $0x480] sm:$0xff] %v609
        %866 = vst [vmem:[%s180 + $0x488] sm:$0xff] %v610
        %867 = vst [vmem:[%s180 + $0x490] sm:$0xff] %v611
        %868 = vst [vmem:[%s180 + $0x498] sm:$0xff] %v612
        %869 = vst [vmem:[%s180 + $0x4a0] sm:$0xff] %v613
        %870 = vst [vmem:[%s180 + $0x4a8] sm:$0xff] %v614
        %871 = vst [vmem:[%s180 + $0x4b0] sm:$0xff] %v615
        %872 = vst [vmem:[%s180 + $0x4b8] sm:$0xff] %v616
        %873 = vst [vmem:[%s180 + $0x4c0] sm:$0xff] %v617
        %874 = vst [vmem:[%s180 + $0x4c8] sm:$0xff] %v618
        %875 = vst [vmem:[%s180 + $0x4d0] sm:$0xff] %v619
        %876 = vst [vmem:[%s180 + $0x4d8] sm:$0xff] %v620
        %877 = vst [vmem:[%s180 + $0x4e0] sm:$0xff] %v621
        %878 = vst [vmem:[%s180 + $0x4e8] sm:$0xff] %v622
        %879 = vst [vmem:[%s180 + $0x4f0] sm:$0xff] %v623
        %880 = vst [vmem:[%s180 + $0x4f8] sm:$0xff] %v624
        %881 = vst [vmem:[%s180 + $0x500] sm:$0xff] %v625
        %882 = vst [vmem:[%s180 + $0x508] sm:$0xff] %v626
        %883 = vst [vmem:[%s180 + $0x510] sm:$0xff] %v627
        %884 = vst [vmem:[%s180 + $0x518] sm:$0xff] %v628
        %885 = vst [vmem:[%s180 + $0x520] sm:$0xff] %v629
        %886 = vst [vmem:[%s180 + $0x528] sm:$0xff] %v630
        %887 = vst [vmem:[%s180 + $0x530] sm:$0xff] %v631
        %888 = vst [vmem:[%s180 + $0x538] sm:$0xff] %v632
        %889 = vst [vmem:[%s180 + $0x540] sm:$0xff] %v633
        %890 = vst [vmem:[%s180 + $0x548] sm:$0xff] %v634
        %891 = vst [vmem:[%s180 + $0x550] sm:$0xff] %v635
        %892 = vst [vmem:[%s180 + $0x558] sm:$0xff] %v636
        %893 = vst [vmem:[%s180 + $0x560] sm:$0xff] %v637
        %894 = vst [vmem:[%s180 + $0x568] sm:$0xff] %v638
        %895 = vst [vmem:[%s180 + $0x570] sm:$0xff] %v639
        %896 = vst [vmem:[%s180 + $0x578] sm:$0xff] %v640
        %897 = vst [vmem:[%s180 + $0x580] sm:$0xff] %v641
        %898 = vst [vmem:[%s180 + $0x588] sm:$0xff] %v642
        %899 = vst [vmem:[%s180 + $0x590] sm:$0xff] %v643
        %900 = vst [vmem:[%s180 + $0x598] sm:$0xff] %v644
        %901 = vst [vmem:[%s180 + $0x5a0] sm:$0xff] %v645
        %902 = vst [vmem:[%s180 + $0x5a8] sm:$0xff] %v646
        %903 = vst [vmem:[%s180 + $0x5b0] sm:$0xff] %v647
        %904 = vst [vmem:[%s180 + $0x5b8] sm:$0xff] %v648
        %905 = vst [vmem:[%s180 + $0x5c0] sm:$0xff] %v649
        %906 = vst [vmem:[%s180 + $0x5c8] sm:$0xff] %v650
        %907 = vst [vmem:[%s180 + $0x5d0] sm:$0xff] %v651
        %908 = vst [vmem:[%s180 + $0x5d8] sm:$0xff] %v652
        %909 = vst [vmem:[%s180 + $0x5e0] sm:$0xff] %v653
        %910 = vst [vmem:[%s180 + $0x5e8] sm:$0xff] %v654
        %911 = vst [vmem:[%s180 + $0x5f0] sm:$0xff] %v655
        %912 = vst [vmem:[%s180 + $0x5f8] sm:$0xff] %v656
        %913 = vst [vmem:[%s180 + $0x600] sm:$0xff] %v657
        %914 = vst [vmem:[%s180 + $0x608] sm:$0xff] %v658
        %915 = vst [vmem:[%s180 + $0x610] sm:$0xff] %v659
        %916 = vst [vmem:[%s180 + $0x618] sm:$0xff] %v660
        %917 = vst [vmem:[%s180 + $0x620] sm:$0xff] %v661
        %918 = vst [vmem:[%s180 + $0x628] sm:$0xff] %v662
        %919 = vst [vmem:[%s180 + $0x630] sm:$0xff] %v663
        %920 = vst [vmem:[%s180 + $0x638] sm:$0xff] %v664
        %921 = vst [vmem:[%s180 + $0x640] sm:$0xff] %v665
        %922 = vst [vmem:[%s180 + $0x648] sm:$0xff] %v666
        %923 = vst [vmem:[%s180 + $0x650] sm:$0xff] %v667
        %924 = vst [vmem:[%s180 + $0x658] sm:$0xff] %v668
        %925 = vst [vmem:[%s180 + $0x660] sm:$0xff] %v669
        %926 = vst [vmem:[%s180 + $0x668] sm:$0xff] %v670
        %927 = vst [vmem:[%s180 + $0x670] sm:$0xff] %v671
        %928 = vst [vmem:[%s180 + $0x678] sm:$0xff] %v672
        %929 = vst [vmem:[%s180 + $0x680] sm:$0xff] %v673
        %930 = vst [vmem:[%s180 + $0x688] sm:$0xff] %v674
        %931 = vst [vmem:[%s180 + $0x690] sm:$0xff] %v675
        %932 = vst [vmem:[%s180 + $0x698] sm:$0xff] %v676
        %933 = vst [vmem:[%s180 + $0x6a0] sm:$0xff] %v677
        %934 = vst [vmem:[%s180 + $0x6a8] sm:$0xff] %v678
        %935 = vst [vmem:[%s180 + $0x6b0] sm:$0xff] %v679
        %936 = vst [vmem:[%s180 + $0x6b8] sm:$0xff] %v680
        %937 = vst [vmem:[%s180 + $0x6c0] sm:$0xff] %v681
        %938 = vst [vmem:[%s180 + $0x6c8] sm:$0xff] %v682
        %939 = vst [vmem:[%s180 + $0x6d0] sm:$0xff] %v683
        %940 = vst [vmem:[%s180 + $0x6d8] sm:$0xff] %v684
        %941 = vst [vmem:[%s180 + $0x6e0] sm:$0xff] %v685
        %942 = vst [vmem:[%s180 + $0x6e8] sm:$0xff] %v686
        %943 = vst [vmem:[%s180 + $0x6f0] sm:$0xff] %v687
        %944 = vst [vmem:[%s180 + $0x6f8] sm:$0xff] %v688
        %945 = vst [vmem:[%s180 + $0x700] sm:$0xff] %v689
        %946 = vst [vmem:[%s180 + $0x708] sm:$0xff] %v690
        %947 = vst [vmem:[%s180 + $0x710] sm:$0xff] %v691
        %948 = vst [vmem:[%s180 + $0x718] sm:$0xff] %v692
        %949 = vst [vmem:[%s180 + $0x720] sm:$0xff] %v693
        %950 = vst [vmem:[%s180 + $0x728] sm:$0xff] %v694
        %951 = vst [vmem:[%s180 + $0x730] sm:$0xff] %v695
        %952 = vst [vmem:[%s180 + $0x738] sm:$0xff] %v696
        %953 = vst [vmem:[%s180 + $0x740] sm:$0xff] %v697
        %954 = vst [vmem:[%s180 + $0x748] sm:$0xff] %v698
        %955 = vst [vmem:[%s180 + $0x750] sm:$0xff] %v699
        %956 = vst [vmem:[%s180 + $0x758] sm:$0xff] %v700
        %957 = vst [vmem:[%s180 + $0x760] sm:$0xff] %v701
        %958 = vst [vmem:[%s180 + $0x768] sm:$0xff] %v702
        %959 = vst [vmem:[%s180 + $0x770] sm:$0xff] %v703
        %960 = vst [vmem:[%s180 + $0x778] sm:$0xff] %v704
        %961 = vst [vmem:[%s180 + $0x780] sm:$0xff] %v705
        %962 = vst [vmem:[%s180 + $0x788] sm:$0xff] %v706
        %963 = vst [vmem:[%s180 + $0x790] sm:$0xff] %v707
        %964 = vst [vmem:[%s180 + $0x798] sm:$0xff] %v708
        %965 = vst [vmem:[%s180 + $0x7a0] sm:$0xff] %v709
        %966 = vst [vmem:[%s180 + $0x7a8] sm:$0xff] %v710
        %967 = vst [vmem:[%s180 + $0x7b0] sm:$0xff] %v711
        %968 = vst [vmem:[%s180 + $0x7b8] sm:$0xff] %v712
        %969 = vst [vmem:[%s180 + $0x7c0] sm:$0xff] %v713
        %970 = vst [vmem:[%s180 + $0x7c8] sm:$0xff] %v714
        %971 = vst [vmem:[%s180 + $0x7d0] sm:$0xff] %v715
        %972 = vst [vmem:[%s180 + $0x7d8] sm:$0xff] %v716
        %973 = vst [vmem:[%s180 + $0x7e0] sm:$0xff] %v717
        %974 = vst [vmem:[%s180 + $0x7e8] sm:$0xff] %v718
        %975 = vst [vmem:[%s180 + $0x7f0] sm:$0xff] %v719
        %976 = vst [vmem:[%s180 + $0x7f8] sm:$0xff] %v720
        %s977 = sand.u32 %s90, 1
        %s978 = scalar_lea.sflag [#allocation4], %s977
        %s979 = sand.u32 %s90, 1
        %s980 = smul.addr %s979, 2048
        %s981 = scalar_lea.vmem [#allocation5], %s980
        // Predicated region
        $region33: #{tpu_custom_call.1} parent=27 // pred_check
          %p982 = pneg %p100
        $region34: #{tpu_custom_call.1} parent=27 // pred_check_branch
          %984 = sbr.rel (%p982) target = $region36
        $region35: #{tpu_custom_call.1} parent=27 // pred_region
          %s985 = smul.u32 4, %s23
          %s986 = smul.u32 64, %s24
          %s988 = ssub.s32 32768, 32768
          %989 = vsyncadd %s978, %s988
          %s990 = smul.addr %s985, 64
          %s991 = sadd.s32 %s986, %s990
          %s992 = smul.addr %s991, 128
          %s993 = scalar_lea.hbm %s2, %s992
          %s994 = sshll.u32 %s981, 4
          %s995 = int_to_ptr.vmem [resolvable:$true] %s994
          %1000 = dma.vmem_to_hbm [thread:$0]  %s995, 32768, %s993, %s978, 8192, 8192, 512
        $region36: #{tpu_custom_call.1} parent=27 // pred_fallthru
          _
      $region28: #{tpu_custom_call.1} parent=5 // pred_fallthru
        _
      %p1001 = scmp.le.s32.totalorder 2, %s14
      // Predicated region
      $region37: #{tpu_custom_call.1} parent=5 // pred_check
        %p1002 = pneg %p1001
      $region38: #{tpu_custom_call.1} parent=5 // pred_check_branch
        %1004 = sbr.rel (%p1002) target = $region40
      $region39: #{tpu_custom_call.1} parent=5 // pred_region
        %s1005 = ssub.s32 %s14, 2
        // Predicated region
        $region41: #{tpu_custom_call.1} parent=39 // pred_check
          %p1006 = pneg %p106
        $region42: #{tpu_custom_call.1} parent=39 // pred_check_branch
          %1008 = sbr.rel (%p1006) target = $region44
        $region43: #{tpu_custom_call.1} parent=39 // pred_region
          %s1009 = sand.u32 %s91, 1
          %s1010 = scalar_lea.sflag [#allocation4], %s1009
          %s1011 = sand.u32 %s91, 1
          %s1012 = smul.addr %s1011, 2048
          %s1013 = scalar_lea.vmem [#allocation5], %s1012
          %1014 = dma.done %s1010, 32768
        $region44: #{tpu_custom_call.1} parent=39 // pred_fallthru
          _
      $region40: #{tpu_custom_call.1} parent=5 // pred_fallthru
        _
    $region6: #{tpu_custom_call.1} parent=1 // loop_footer
      %s18 = sadd.s32 1, %s14
    $region7: #{tpu_custom_call.1} parent=1 // loop_footer_branch
      %13 = sbr.rel target = $region3
    $region8: #{tpu_custom_call.1} parent=1 // loop_exit
      _
    %1015 = vsyncpa [#allocation3], 1
    %s1016 = scalar_lea.sflag [#allocation3], 1
    %1017 = vsyncpa %s1016, 1
    %1018 = vsyncpa [#allocation4], 1
    %s1019 = scalar_lea.sflag [#allocation4], 1
    %1020 = vsyncpa %s1019, 1

</llo_original>
